<compile_context>
chip_gen: v7x
topology: tpu7x:2x2x1
jax: 0.10.0
libtpu: 0.0.40
codegen_flags: <defaults>
</compile_context>

<pallas_src>
import functools

import jax
import jax.numpy as jnp
from jax.experimental import pallas as pl
from jax.experimental.pallas import tpu as pltpu

_LANE = 128
_SUBLANE = 8
_GRIDLESS_MAX_BATCH = 1024   # <= this many rows: single gridless fused call
_MAX_BATCH_TILE = 2048       # upper bound on the batch tile of the gridded path
_VMEM_TILE_BUDGET = 6 * 1024 * 1024  # per-buffer budget for in+out blocks (bytes)


def _round_up(n, m):
    return ((n + m - 1) // m) * m


def _apply_activation(h, activation):
    if activation == "relu":
        return jnp.maximum(h, 0.0)
    if activation == "sigmoid":
        return jax.nn.sigmoid(h)
    if activation == "tanh":
        return jnp.tanh(h)
    raise ValueError(f"unsupported activation: {activation}")


def _mlp_kernel(*refs, num_layers, activation):
    """Fused MLP.  refs = (x, w0, b0, w1, b1, ..., w_{L-1}, b_{L-1}, out).

    Layer 0 is input_layer (no activation), layers 1..L-2 are the hidden fc
    layers (activation), layer L-1 is output_layer (no activation).  Dropout
    layers are identity at inference.
    """
    x_ref = refs[0]
    o_ref = refs[-1]
    wb = refs[1:-1]

    h = x_ref[...].astype(jnp.float32)
    for li in range(num_layers):
        w = wb[2 * li][...]            # bf16 (in_f, out_f)
        b = wb[2 * li + 1][...]        # f32  (1, out_f) -> broadcasts over batch
        h = jnp.dot(h.astype(jnp.bfloat16), w,
                    preferred_element_type=jnp.float32) + b
        if 0 < li < num_layers - 1:    # activation only on the hidden fc layers
            h = _apply_activation(h, activation)
    o_ref[...] = h.astype(o_ref.dtype)


def fully_connected_forward(x, params, activation="relu"):
    """Mirrors TorchFullyConnected.forward (eval mode: dropout == identity).

    x: (B, input_size) f32
    params: ((w_in, b_in), [(w_h, b_h), ...], (w_out, b_out)) with weights
            stored as (in_features, out_features) == W_torch.T so y = x @ W + b.
    """
    (w_in, b_in), hidden, (w_out, b_out) = params
    layer_params = [(w_in, b_in)] + list(hidden) + [(w_out, b_out)]
    num_layers = len(layer_params)

    B, in_f = x.shape
    out_f = layer_params[-1][0].shape[1]

    # Feature sizes per layer boundary.  Only HIDDEN dims are padded to the
    # lane width; in_f / out_f stay unpadded (full-array last dims in the
    # BlockSpecs => no HBM byte amplification, no wrapper-side pad pass).
    feat = [in_f] + [w.shape[1] for (w, _) in layer_params]
    feat_p = list(feat)
    for i in range(1, len(feat) - 1):
        feat_p[i] = _round_up(feat[i], _LANE)

    flat = [x.astype(jnp.float32)]
    for li, (w, b) in enumerate(layer_params):
        fi, fo = feat_p[li], feat_p[li + 1]
        # INVARIANT: padded weight rows/cols are ZERO so padded hidden lanes
        # (act(0), e.g. sigmoid -> 0.5) never leak into real outputs.
        w_p = jnp.pad(w.astype(jnp.float32),
                      ((0, fi - w.shape[0]), (0, fo - w.shape[1])))
        b_p = jnp.pad(b.astype(jnp.float32).reshape(1, -1),
                      ((0, 0), (0, fo - b.shape[0])))
        flat.append(w_p.astype(jnp.bfloat16))   # bf16 MXU operand
        flat.append(b_p)                        # f32 bias

    kernel = functools.partial(_mlp_kernel, num_layers=num_layers,
                               activation=activation)

    if B <= _GRIDLESS_MAX_BATCH:
        # Gridless: whole (tiny) problem lives in VMEM; one launch, no
        # pipelining machinery, no per-layer HBM round-trips.
        return pl.pallas_call(
            kernel,
            out_shape=jax.ShapeDtypeStruct((B, out_f), jnp.float32),
            in_specs=[pl.BlockSpec(memory_space=pltpu.MemorySpace.VMEM)] * len(flat),
            out_specs=pl.BlockSpec(memory_space=pltpu.MemorySpace.VMEM),
        )(*flat)

    # Gridded path: tile ONLY the batch dim.  Tile sizing:
    #   * >= 2 grid steps so both TensorCores get work on v7x,
    #   * as large as possible (amortize ~0.35 us per-step overhead), capped
    #     at 2048 rows,
    #   * double-buffered in+out blocks stay within a ~6 MiB budget so the
    #     v5e 16 MiB scoped-VMEM default needs no override.
    bytes_per_row = 4 * (in_f + out_f)
    budget_rows = max(_SUBLANE,
                      ((_VMEM_TILE_BUDGET // (2 * bytes_per_row))
                       // _SUBLANE) * _SUBLANE)
    half_batch = _round_up(-(-B // 2), _SUBLANE)   # ceil(B/2) rounded to sublane
    Bt = max(_SUBLANE, min(_MAX_BATCH_TILE, budget_rows, half_batch))
    grid = (pl.cdiv(B, Bt),)   # last block may be partial; Pallas masks OOB rows

    in_specs = [pl.BlockSpec((Bt, in_f), lambda i: (i, 0))]
    for li in range(num_layers):
        fi, fo = feat_p[li], feat_p[li + 1]
        # Constant index maps: weights/biases DMA'd once, resident across steps.
        in_specs.append(pl.BlockSpec((fi, fo), lambda i: (0, 0)))
        in_specs.append(pl.BlockSpec((1, fo), lambda i: (0, 0)))

    return pl.pallas_call(
        kernel,
        out_shape=jax.ShapeDtypeStruct((B, out_f), jnp.float32),
        grid=grid,
        in_specs=in_specs,
        out_specs=pl.BlockSpec((Bt, out_f), lambda i: (i, 0)),
        compiler_params=pltpu.CompilerParams(
            dimension_semantics=("parallel",)),
    )(*flat)


def _reference_forward(x, params, activation="relu"):
    """Plain-JAX f32 reference of the same forward pass."""
    (w_in, b_in), hidden, (w_out, b_out) = params
    act = {"relu": lambda t: jnp.maximum(t, 0.0),
           "sigmoid": jax.nn.sigmoid,
           "tanh": jnp.tanh}[activation]
    out = x @ w_in + b_in                 # input_layer: no activation (per spec)
    for (w_h, b_h) in hidden:
        out = act(out @ w_h + b_h)
    return out @ w_out + b_out            # output_layer: no activation


def init_params(key, input_size, layers, output_size):
    """Deterministic synthetic parameters (shapes match the nn.Linear layers)."""
    sizes = [input_size] + list(layers)
    params_hidden = []
    keys = jax.random.split(key, len(sizes) + 1)

    def make_linear(k, in_f, out_f):
        kw, kb = jax.random.split(k)
        bound = 1.0 / jnp.sqrt(in_f)
        w = jax.random.uniform(kw, (in_f, out_f), jnp.float32, -bound, bound)
        b = jax.random.uniform(kb, (out_f,), jnp.float32, -bound, bound)
        return w, b

    w_in, b_in = make_linear(keys[0], input_size, sizes[1])
    for i, (in_f, out_f) in enumerate(zip(sizes[1:-1], sizes[2:])):
        params_hidden.append(make_linear(keys[i + 1], in_f, out_f))
    w_out, b_out = make_linear(keys[-1], sizes[-1], output_size)
    return (w_in, b_in), params_hidden, (w_out, b_out)


if __name__ == "__main__":
    # Small config consistent with the module: params['layers'] = (64, 64)
    # => input_layer (32->64), one hidden fc (64->64) + relu, output_layer (64->16).
    batch = 8
    input_size = 32
    layers = (64, 64)
    output_size = 16
    activation = "relu"
    # TODO(synk): nn.Dropout training-mode masking is not implemented (identity at eval).

    key = jax.random.PRNGKey(0)
    k_x, k_p, k_x2, k_x3 = jax.random.split(key, 4)
    x = jax.random.normal(k_x, (batch, input_size), dtype=jnp.float32)
    params = init_params(k_p, input_size, layers, output_size)

    fwd = jax.jit(fully_connected_forward, static_argnames=("activation",))

    # bf16 MXU operands (f32 accumulation) => loosened tolerance vs f32 reference.
    ATOL, RTOL = 5e-2, 5e-2

    # 1) Tiny batch -> gridless fused path.
    out = jax.block_until_ready(fwd(x, params, activation=activation))
    ref = _reference_forward(x, params, activation=activation)
    assert out.shape == (batch, output_size)
    assert jnp.allclose(out, ref, atol=ATOL, rtol=RTOL), \
        float(jnp.max(jnp.abs(out - ref)))

    # 2) Non-multiple-of-8 batch, still gridless.
    x_mid = jax.random.normal(k_x2, (300, input_size), dtype=jnp.float32)
    out_mid = jax.block_until_ready(fwd(x_mid, params, activation=activation))
    ref_mid = _reference_forward(x_mid, params, activation=activation)
    assert out_mid.shape == (300, output_size)
    assert jnp.allclose(out_mid, ref_mid, atol=ATOL, rtol=RTOL), \
        float(jnp.max(jnp.abs(out_mid - ref_mid)))

    # 3) Batch-tiled "parallel" grid path with a partial last block
    #    (B=1300 -> Bt=656, grid=2, last block masked).
    x_big = jax.random.normal(k_x3, (1300, input_size), dtype=jnp.float32)
    out_big = jax.block_until_ready(fwd(x_big, params, activation=activation))
    ref_big = _reference_forward(x_big, params, activation=activation)
    assert out_big.shape == (1300, output_size)
    assert jnp.allclose(out_big, ref_big, atol=ATOL, rtol=RTOL), \
        float(jnp.max(jnp.abs(out_big - ref_big)))

    print("KERNEL_OK")
</pallas_src>

<mosaic_0001>
module attributes {stable_mosaic.version = 11 : i64} {
  func.func @_mlp_kernel(%arg0: memref<8x32xf32, #tpu.memory_space<vmem>>, %arg1: memref<32x128xbf16, #tpu.memory_space<vmem>>, %arg2: memref<1x128xf32, #tpu.memory_space<vmem>>, %arg3: memref<128x128xbf16, #tpu.memory_space<vmem>>, %arg4: memref<1x128xf32, #tpu.memory_space<vmem>>, %arg5: memref<128x16xbf16, #tpu.memory_space<vmem>>, %arg6: memref<1x16xf32, #tpu.memory_space<vmem>>, %arg7: memref<8x16xf32, #tpu.memory_space<vmem>>) attributes {dimension_semantics = [], scalar_prefetch = 0 : i64, scratch_operands = 0 : i64, tpu.core_type = #tpu.core_type<tc>} {
    %c0 = arith.constant 0 : index
    %c0_0 = arith.constant 0 : index
    %0 = vector.load %arg0[%c0, %c0_0] : memref<8x32xf32, #tpu.memory_space<vmem>>, vector<8x32xf32>
    %c0_1 = arith.constant 0 : index
    %c0_2 = arith.constant 0 : index
    %1 = vector.load %arg1[%c0_1, %c0_2] : memref<32x128xbf16, #tpu.memory_space<vmem>>, vector<32x128xbf16>
    %c0_3 = arith.constant 0 : index
    %c0_4 = arith.constant 0 : index
    %2 = vector.load %arg2[%c0_3, %c0_4] : memref<1x128xf32, #tpu.memory_space<vmem>>, vector<1x128xf32>
    %3 = arith.truncf %0 : vector<8x32xf32> to vector<8x32xbf16>
    %cst = arith.constant dense<0.000000e+00> : vector<8x128xf32>
    %4 = tpu.matmul %3, %1, %cst {dimension_numbers = #tpu.dot_dimension_numbers<[1], [0], [0], [1], [0, 0, 1, 1], [], []>} : vector<8x32xbf16>, vector<32x128xbf16>, vector<8x128xf32> -> vector<8x128xf32>
    %5 = vector.broadcast %2 : vector<1x128xf32> to vector<8x128xf32>
    %6 = arith.addf %4, %5 : vector<8x128xf32>
    %c0_5 = arith.constant 0 : index
    %c0_6 = arith.constant 0 : index
    %7 = vector.load %arg3[%c0_5, %c0_6] : memref<128x128xbf16, #tpu.memory_space<vmem>>, vector<128x128xbf16>
    %c0_7 = arith.constant 0 : index
    %c0_8 = arith.constant 0 : index
    %8 = vector.load %arg4[%c0_7, %c0_8] : memref<1x128xf32, #tpu.memory_space<vmem>>, vector<1x128xf32>
    %9 = arith.truncf %6 : vector<8x128xf32> to vector<8x128xbf16>
    %cst_9 = arith.constant dense<0.000000e+00> : vector<8x128xf32>
    %10 = tpu.matmul %9, %7, %cst_9 {dimension_numbers = #tpu.dot_dimension_numbers<[1], [0], [0], [1], [0, 0, 1, 1], [], []>} : vector<8x128xbf16>, vector<128x128xbf16>, vector<8x128xf32> -> vector<8x128xf32>
    %11 = vector.broadcast %8 : vector<1x128xf32> to vector<8x128xf32>
    %12 = arith.addf %10, %11 : vector<8x128xf32>
    %cst_10 = arith.constant 0.000000e+00 : f32
    %13 = vector.broadcast %cst_10 : f32 to vector<8x128xf32>
    %14 = arith.maximumf %12, %13 : vector<8x128xf32>
    %c0_11 = arith.constant 0 : index
    %c0_12 = arith.constant 0 : index
    %15 = vector.load %arg5[%c0_11, %c0_12] : memref<128x16xbf16, #tpu.memory_space<vmem>>, vector<128x16xbf16>
    %c0_13 = arith.constant 0 : index
    %c0_14 = arith.constant 0 : index
    %16 = vector.load %arg6[%c0_13, %c0_14] : memref<1x16xf32, #tpu.memory_space<vmem>>, vector<1x16xf32>
    %17 = arith.truncf %14 : vector<8x128xf32> to vector<8x128xbf16>
    %cst_15 = arith.constant dense<0.000000e+00> : vector<8x16xf32>
    %18 = tpu.matmul %17, %15, %cst_15 {dimension_numbers = #tpu.dot_dimension_numbers<[1], [0], [0], [1], [0, 0, 1, 1], [], []>} : vector<8x128xbf16>, vector<128x16xbf16>, vector<8x16xf32> -> vector<8x16xf32>
    %19 = vector.broadcast %16 : vector<1x16xf32> to vector<8x16xf32>
    %20 = arith.addf %18, %19 : vector<8x16xf32>
    %c0_16 = arith.constant 0 : index
    %c0_17 = arith.constant 0 : index
    %21 = vector.load %arg7[%c0_16, %c0_17] : memref<8x16xf32, #tpu.memory_space<vmem>>, vector<8x16xf32>
    tpu.vector_store %arg7[%c0_16, %c0_17], %20 {strides = array<i32>} : memref<8x16xf32, #tpu.memory_space<vmem>>, vector<8x16xf32>,
    return
  }
}

</mosaic_0001>

<llo_original>
// kernel: fully_connected_forward.1
$region0: #{fully_connected_forward.1}
  #allocation0 [shape = 'u32[]', space=smem, size = 0x4, offset = 0x4, fixed_abs, tag = 'smem constant byte address 0x4 - core index']
  #allocation1 [shape = 'u32[144,128]{1,0:T(1,128)}', space=vmem, size = 0x12000, scoped, tag = 'internal scratch']
  %s0 = inlined_call_operand.vmem [shape: f32[8,32], index: 0, kind: input, shape index: {}]
  %s1 = inlined_call_operand.vmem [shape: bf16[32,128], index: 1, kind: input, shape index: {}]
  %s2 = inlined_call_operand.vmem [shape: f32[1,128], index: 2, kind: input, shape index: {}]
  %s3 = inlined_call_operand.vmem [shape: bf16[128,128], index: 3, kind: input, shape index: {}]
  %s4 = inlined_call_operand.vmem [shape: f32[1,128], index: 4, kind: input, shape index: {}]
  %s5 = inlined_call_operand.vmem [shape: bf16[128,16], index: 5, kind: input, shape index: {}]
  %s6 = inlined_call_operand.vmem [shape: f32[1,16], index: 6, kind: input, shape index: {}]
  %s7 = inlined_call_operand.hbm [shape: f32[8,16], index: 7, kind: output, shape index: {}]
  %s8 = sld [smem:[#allocation0]]
  $region38: #{fully_connected_forward.1} parent=0
    _
  %s10 = ssub.s32 1, %s8
  %s11 = scalar_select 0, %s10, %s8
  $region1: #{fully_connected_forward.1} parent=0
    #allocation2 [shape = 'u8[4096]{0}', space=vmem, size = 0x1000, scoped, tag = 'output window, operand 0, single buffered']
    #allocation3 [shape = 's32[1]{0}', space=sflag, size = 0x4, scoped, tag = 'scoped memory for fully_connected_forward.1']
    %12 = vsyncpa [#allocation3], 0
    // Predicated region
    $region2: #{fully_connected_forward.1} parent=1 // pred_check
      _
    $region3: #{fully_connected_forward.1} parent=1 // pred_check_branch
      %14 = sbr.rel (0) target = $region5
    $region4: #{fully_connected_forward.1} parent=1 // pred_region
      _
    $region5: #{fully_connected_forward.1} parent=1 // pred_fallthru
      _
    // Predicated region
    $region6: #{fully_connected_forward.1} parent=1 // pred_check
      _
    $region7: #{fully_connected_forward.1} parent=1 // pred_check_branch
      %16 = sbr.rel (0) target = $region9
    $region8: #{fully_connected_forward.1} parent=1 // pred_region
      _
    $region9: #{fully_connected_forward.1} parent=1 // pred_fallthru
      _
    // Predicated region
    $region10: #{fully_connected_forward.1} parent=1 // pred_check
      _
    $region11: #{fully_connected_forward.1} parent=1 // pred_check_branch
      %18 = sbr.rel (0) target = $region13
    $region12: #{fully_connected_forward.1} parent=1 // pred_region
      _
    $region13: #{fully_connected_forward.1} parent=1 // pred_fallthru
      _
    // Predicated region
    $region14: #{fully_connected_forward.1} parent=1 // pred_check
      _
    $region15: #{fully_connected_forward.1} parent=1 // pred_check_branch
      %20 = sbr.rel (0) target = $region17
    $region16: #{fully_connected_forward.1} parent=1 // pred_region
      _
    $region17: #{fully_connected_forward.1} parent=1 // pred_fallthru
      _
    // Predicated region
    $region18: #{fully_connected_forward.1} parent=1 // pred_check
      _
    $region19: #{fully_connected_forward.1} parent=1 // pred_check_branch
      %22 = sbr.rel (0) target = $region21
    $region20: #{fully_connected_forward.1} parent=1 // pred_region
      _
    $region21: #{fully_connected_forward.1} parent=1 // pred_fallthru
      _
    // Predicated region
    $region22: #{fully_connected_forward.1} parent=1 // pred_check
      _
    $region23: #{fully_connected_forward.1} parent=1 // pred_check_branch
      %24 = sbr.rel (0) target = $region25
    $region24: #{fully_connected_forward.1} parent=1 // pred_region
      _
    $region25: #{fully_connected_forward.1} parent=1 // pred_fallthru
      _
    // Predicated region
    $region26: #{fully_connected_forward.1} parent=1 // pred_check
      _
    $region27: #{fully_connected_forward.1} parent=1 // pred_check_branch
      %26 = sbr.rel (0) target = $region29
    $region28: #{fully_connected_forward.1} parent=1 // pred_region
      _
    $region29: #{fully_connected_forward.1} parent=1 // pred_fallthru
      _
    %v28 = vld [vmem:[%s0] sm:$0xff]
    %v29 = vld [vmem:[%s1] sm:$0xf]
    %v30 = vld [vmem:[%s1 + $0x4] sm:$0xf]
    %v31 = vld [vmem:[%s1 + $0x8] sm:$0xf]
    %v32 = vld [vmem:[%s1 + $0xc] sm:$0xf]
    %v33 = vld [vmem:[%s2] sm:$0x1]
    %v34 = vpack.c.bf16 %v28, %v28
    %v36 = vlaneseq
    %v37 = vshrl.u32 %v36, 7
    %v38 = vsub.s32 0, %v37
    %v39 = vrot.slane %v33, %v38
    %v45 = vunpack.c.l.b16 %v29
    %v46 = vunpack.c.l.b16 %v30
    %v47 = vunpack.c.l.b16 %v31
    %v48 = vunpack.c.l.b16 %v32
    %v49 = vpack.c.b16 %v46, %v45
    %v50 = vpack.c.b16 %v48, %v47
    %vm53 = vcmask 261120
    %v55 = vsel %vm53, %v34, 0
    %57 = vmatprep.subr.bf16.mxu0 0
    %58 = vmatpush1.bf16.msra.mxu0 %v49
    %59 = vmatprep.subr.bf16.mxu0 0
    %60 = vmatpush1.bf16.msra.mxu0 %v50
    %61 = vmatprep.subr.bf16.mxu0 0
    %62 = vmatpush1.bf16.msra.mxu0 0
    %63 = vmatprep.subr.bf16.mxu0 0
    %64 = vmatpush1.bf16.msra.mxu0 0
    %65 = vmatprep.subr.bf16.mxu0 0
    %66 = vmatpush1.bf16.msra.mxu0 0
    %67 = vmatprep.subr.bf16.mxu0 0
    %68 = vmatpush1.bf16.msra.mxu0 0
    %69 = vmatprep.subr.bf16.mxu0 0
    %70 = vmatpush1.bf16.msra.mxu0 0
    %71 = vmatprep.subr.bf16.mxu0 0
    %72 = vmatpush1.bf16.msra.mxu0 0
    %73 = vmatprep.subr.bf16.mxu0 0
    %74 = vmatpush1.bf16.msra.mxu0 0
    %75 = vmatprep.subr.bf16.mxu0 0
    %76 = vmatpush1.bf16.msra.mxu0 0
    %77 = vmatprep.subr.bf16.mxu0 0
    %78 = vmatpush1.bf16.msra.mxu0 0
    %79 = vmatprep.subr.bf16.mxu0 0
    %80 = vmatpush1.bf16.msra.mxu0 0
    %81 = vmatprep.subr.bf16.mxu0 0
    %82 = vmatpush1.bf16.msra.mxu0 0
    %83 = vmatprep.subr.bf16.mxu0 0
    %84 = vmatpush1.bf16.msra.mxu0 0
    %85 = vmatprep.subr.bf16.mxu0 0
    %86 = vmatpush1.bf16.msra.mxu0 0
    %87 = vmatprep.subr.bf16.mxu0 0
    %88 = vmatpush1.bf16.msra.mxu0 0
    %89 = vmatprep.mubr.bf16.mxu0 0
    %90 = vmatmul.mubr.bf16.gmra.mrb[0].mxu0 %v55
    %v91 = vpop.f32.mrb[0].mxu0
    %v92 = vadd.f32 %v39, %v91
    %v93 = vpop.f32.mrb[0].mxu0
    %v94 = vpop.f32.mrb[0].mxu0
    %v95 = vpop.f32.mrb[0].mxu0
    %96 = vdwg.mxu0
    %v97 = vld [vmem:[%s3] sm:$0xf]
    %v98 = vld [vmem:[%s3 + $0x4] sm:$0xf]
    %v99 = vld [vmem:[%s3 + $0x8] sm:$0xf]
    %v100 = vld [vmem:[%s3 + $0xc] sm:$0xf]
    %v101 = vld [vmem:[%s3 + $0x10] sm:$0xf]
    %v102 = vld [vmem:[%s3 + $0x14] sm:$0xf]
    %v103 = vld [vmem:[%s3 + $0x18] sm:$0xf]
    %v104 = vld [vmem:[%s3 + $0x1c] sm:$0xf]
    %v105 = vld [vmem:[%s3 + $0x20] sm:$0xf]
    %v106 = vld [vmem:[%s3 + $0x24] sm:$0xf]
    %v107 = vld [vmem:[%s3 + $0x28] sm:$0xf]
    %v108 = vld [vmem:[%s3 + $0x2c] sm:$0xf]
    %v109 = vld [vmem:[%s3 + $0x30] sm:$0xf]
    %v110 = vld [vmem:[%s3 + $0x34] sm:$0xf]
    %v111 = vld [vmem:[%s3 + $0x38] sm:$0xf]
    %v112 = vld [vmem:[%s3 + $0x3c] sm:$0xf]
    %v113 = vld [vmem:[%s4] sm:$0x1]
    %v114 = vpack.c.bf16 %v92, %v92
    %v116 = vlaneseq
    %v117 = vshrl.u32 %v116, 7
    %v118 = vsub.s32 0, %v117
    %v119 = vrot.slane %v113, %v118
    %v137 = vunpack.c.l.b16 %v97
    %v138 = vunpack.c.l.b16 %v98
    %v139 = vunpack.c.l.b16 %v99
    %v140 = vunpack.c.l.b16 %v100
    %v141 = vunpack.c.l.b16 %v101
    %v142 = vunpack.c.l.b16 %v102
    %v143 = vunpack.c.l.b16 %v103
    %v144 = vunpack.c.l.b16 %v104
    %v145 = vunpack.c.l.b16 %v105
    %v146 = vunpack.c.l.b16 %v106
    %v147 = vunpack.c.l.b16 %v107
    %v148 = vunpack.c.l.b16 %v108
    %v149 = vunpack.c.l.b16 %v109
    %v150 = vunpack.c.l.b16 %v110
    %v151 = vunpack.c.l.b16 %v111
    %v152 = vunpack.c.l.b16 %v112
    %v153 = vpack.c.b16 %v138, %v137
    %v154 = vpack.c.b16 %v140, %v139
    %v155 = vpack.c.b16 %v142, %v141
    %v156 = vpack.c.b16 %v144, %v143
    %v157 = vpack.c.b16 %v146, %v145
    %v158 = vpack.c.b16 %v148, %v147
    %v159 = vpack.c.b16 %v150, %v149
    %v160 = vpack.c.b16 %v152, %v151
    %169 = vmatprep.subr.bf16.mxu0 0
    %170 = vmatpush1.bf16.msra.mxu0 %v153
    %171 = vmatprep.subr.bf16.mxu0 0
    %172 = vmatpush1.bf16.msra.mxu0 %v154
    %173 = vmatprep.subr.bf16.mxu0 0
    %174 = vmatpush1.bf16.msra.mxu0 %v155
    %175 = vmatprep.subr.bf16.mxu0 0
    %176 = vmatpush1.bf16.msra.mxu0 %v156
    %177 = vmatprep.subr.bf16.mxu0 0
    %178 = vmatpush1.bf16.msra.mxu0 %v157
    %179 = vmatprep.subr.bf16.mxu0 0
    %180 = vmatpush1.bf16.msra.mxu0 %v158
    %181 = vmatprep.subr.bf16.mxu0 0
    %182 = vmatpush1.bf16.msra.mxu0 %v159
    %183 = vmatprep.subr.bf16.mxu0 0
    %184 = vmatpush1.bf16.msra.mxu0 %v160
    %185 = vmatprep.subr.bf16.mxu0 0
    %186 = vmatpush1.bf16.msra.mxu0 0
    %187 = vmatprep.subr.bf16.mxu0 0
    %188 = vmatpush1.bf16.msra.mxu0 0
    %189 = vmatprep.subr.bf16.mxu0 0
    %190 = vmatpush1.bf16.msra.mxu0 0
    %191 = vmatprep.subr.bf16.mxu0 0
    %192 = vmatpush1.bf16.msra.mxu0 0
    %193 = vmatprep.subr.bf16.mxu0 0
    %194 = vmatpush1.bf16.msra.mxu0 0
    %195 = vmatprep.subr.bf16.mxu0 0
    %196 = vmatpush1.bf16.msra.mxu0 0
    %197 = vmatprep.subr.bf16.mxu0 0
    %198 = vmatpush1.bf16.msra.mxu0 0
    %199 = vmatprep.subr.bf16.mxu0 0
    %200 = vmatpush1.bf16.msra.mxu0 0
    %201 = vmatprep.mubr.bf16.mxu0 0
    %202 = vmatmul.mubr.bf16.gmra.mrb[0].mxu0 %v114
    %v203 = vpop.f32.mrb[0].mxu0
    %v204 = vadd.f32 %v119, %v203
    %v205 = vpop.f32.mrb[0].mxu0
    %v206 = vpop.f32.mrb[0].mxu0
    %v207 = vpop.f32.mrb[0].mxu0
    %208 = vdwg.mxu0
    %v209 = vmax.f32 %v204, 0.0
    %v210 = vld [vmem:[%s5] sm:$0xf]
    %v211 = vld [vmem:[%s5 + $0x4] sm:$0xf]
    %v212 = vld [vmem:[%s5 + $0x8] sm:$0xf]
    %v213 = vld [vmem:[%s5 + $0xc] sm:$0xf]
    %v214 = vld [vmem:[%s5 + $0x10] sm:$0xf]
    %v215 = vld [vmem:[%s5 + $0x14] sm:$0xf]
    %v216 = vld [vmem:[%s5 + $0x18] sm:$0xf]
    %v217 = vld [vmem:[%s5 + $0x1c] sm:$0xf]
    %v218 = vld [vmem:[%s5 + $0x20] sm:$0xf]
    %v219 = vld [vmem:[%s5 + $0x24] sm:$0xf]
    %v220 = vld [vmem:[%s5 + $0x28] sm:$0xf]
    %v221 = vld [vmem:[%s5 + $0x2c] sm:$0xf]
    %v222 = vld [vmem:[%s5 + $0x30] sm:$0xf]
    %v223 = vld [vmem:[%s5 + $0x34] sm:$0xf]
    %v224 = vld [vmem:[%s5 + $0x38] sm:$0xf]
    %v225 = vld [vmem:[%s5 + $0x3c] sm:$0xf]
    %v226 = vld [vmem:[%s6] sm:$0x1]
    %v227 = vpack.c.bf16 %v209, %v209
    %v229 = vlaneseq
    %v230 = vshrl.u32 %v229, 7
    %v231 = vsub.s32 0, %v230
    %v232 = vrot.slane %v226, %v231
    %v250 = vunpack.c.l.b16 %v210
    %v251 = vunpack.c.l.b16 %v211
    %v252 = vunpack.c.l.b16 %v212
    %v253 = vunpack.c.l.b16 %v213
    %v254 = vunpack.c.l.b16 %v214
    %v255 = vunpack.c.l.b16 %v215
    %v256 = vunpack.c.l.b16 %v216
    %v257 = vunpack.c.l.b16 %v217
    %v258 = vunpack.c.l.b16 %v218
    %v259 = vunpack.c.l.b16 %v219
    %v260 = vunpack.c.l.b16 %v220
    %v261 = vunpack.c.l.b16 %v221
    %v262 = vunpack.c.l.b16 %v222
    %v263 = vunpack.c.l.b16 %v223
    %v264 = vunpack.c.l.b16 %v224
    %v265 = vunpack.c.l.b16 %v225
    %v266 = vpack.c.b16 %v251, %v250
    %v267 = vpack.c.b16 %v253, %v252
    %v268 = vpack.c.b16 %v255, %v254
    %v269 = vpack.c.b16 %v257, %v256
    %v270 = vpack.c.b16 %v259, %v258
    %v271 = vpack.c.b16 %v261, %v260
    %v272 = vpack.c.b16 %v263, %v262
    %v273 = vpack.c.b16 %v265, %v264
    %282 = vmatprep.subr.bf16.mxu0 0
    %283 = vmatpush1.bf16.msra.mxu0 %v266
    %284 = vmatprep.subr.bf16.mxu0 0
    %285 = vmatpush1.bf16.msra.mxu0 %v267
    %286 = vmatprep.subr.bf16.mxu0 0
    %287 = vmatpush1.bf16.msra.mxu0 %v268
    %288 = vmatprep.subr.bf16.mxu0 0
    %289 = vmatpush1.bf16.msra.mxu0 %v269
    %290 = vmatprep.subr.bf16.mxu0 0
    %291 = vmatpush1.bf16.msra.mxu0 %v270
    %292 = vmatprep.subr.bf16.mxu0 0
    %293 = vmatpush1.bf16.msra.mxu0 %v271
    %294 = vmatprep.subr.bf16.mxu0 0
    %295 = vmatpush1.bf16.msra.mxu0 %v272
    %296 = vmatprep.subr.bf16.mxu0 0
    %297 = vmatpush1.bf16.msra.mxu0 %v273
    %298 = vmatprep.subr.bf16.mxu0 0
    %299 = vmatpush1.bf16.msra.mxu0 0
    %300 = vmatprep.subr.bf16.mxu0 0
    %301 = vmatpush1.bf16.msra.mxu0 0
    %302 = vmatprep.subr.bf16.mxu0 0
    %303 = vmatpush1.bf16.msra.mxu0 0
    %304 = vmatprep.subr.bf16.mxu0 0
    %305 = vmatpush1.bf16.msra.mxu0 0
    %306 = vmatprep.subr.bf16.mxu0 0
    %307 = vmatpush1.bf16.msra.mxu0 0
    %308 = vmatprep.subr.bf16.mxu0 0
    %309 = vmatpush1.bf16.msra.mxu0 0
    %310 = vmatprep.subr.bf16.mxu0 0
    %311 = vmatpush1.bf16.msra.mxu0 0
    %312 = vmatprep.subr.bf16.mxu0 0
    %313 = vmatpush1.bf16.msra.mxu0 0
    %314 = vmatprep.mubr.bf16.mxu0 0
    %315 = vmatmul.mubr.bf16.gmra.mrb[0].mxu0 %v227
    %v316 = vpop.f32.mrb[0].mxu0
    %v317 = vadd.f32 %v232, %v316
    %v318 = vpop.f32.mrb[0].mxu0
    %v319 = vpop.f32.mrb[0].mxu0
    %v320 = vpop.f32.mrb[0].mxu0
    %321 = vdwg.mxu0
    %vm322 = vcmask 130048
    %323 = vst.msk [vmem:[#allocation2] sm:$0xff] %vm322, %v317
    // Predicated region
    $region30: #{fully_connected_forward.1} parent=1 // pred_check
      _
    $region31: #{fully_connected_forward.1} parent=1 // pred_check_branch
      %325 = sbr.rel (0) target = $region33
    $region32: #{fully_connected_forward.1} parent=1 // pred_region
      %s327 = ssub.s32 128, 128
      %328 = vsyncadd [#allocation3], %s327
      %s330 = sshll.u32 [#allocation2], 4
      %s331 = int_to_ptr.vmem [resolvable:$true] %s330
      %333 = dma.vmem_to_hbm [thread:$0]  %s331, 128, %s7, [#allocation3]
    $region33: #{fully_connected_forward.1} parent=1 // pred_fallthru
      _
    // Predicated region
    $region34: #{fully_connected_forward.1} parent=1 // pred_check
      _
    $region35: #{fully_connected_forward.1} parent=1 // pred_check_branch
      %335 = sbr.rel (0) target = $region37
    $region36: #{fully_connected_forward.1} parent=1 // pred_region
      %336 = dma.done [#allocation3], 128
    $region37: #{fully_connected_forward.1} parent=1 // pred_fallthru
      _
    %337 = vsyncpa [#allocation3], 1

</llo_original>
